<compile_context>
chip_gen: v7x
topology: tpu7x:2x2x1
jax: 0.10.0
libtpu: 0.0.40
codegen_flags: <defaults>
</compile_context>

<pallas_src>
import functools

import numpy as np
import jax
import jax.numpy as jnp
from jax import lax
from jax.experimental import pallas as pl
from jax.experimental.pallas import tpu as pltpu

EPS = 1e-5


def _convblock_kernel(x_ref, a1_ref, a2_ref, gb_ref, o_ref, *, H, W, Cout):
    BH = x_ref.shape[0]
    WCout = W * Cout
    n_red = float(BH * W)            # elements per channel for the BN stats

    # Row-validity masks for the kh=0 / kh=2 taps (zero padding in H).
    h_idx = lax.broadcasted_iota(jnp.int32, (BH, 1), 0) % H
    top_ok = h_idx > 0               # row h-1 exists inside the same image
    bot_ok = h_idx < (H - 1)         # row h+1 exists inside the same image

    gb = gb_ref[...]                 # (4, W*Cout) f32: g1, b1, g2, b2 (tiled over w)

    def conv3x3(x, a_ref):
        # x: (B*H, W*Cin_or_Cout) f32.  One MXU matmul per kh tap, full batch as M.
        z = jnp.zeros((1, x.shape[1]), x.dtype)
        x_up = jnp.where(top_ok, jnp.concatenate([z, x[:-1, :]], axis=0), 0.0)  # row h-1
        x_dn = jnp.where(bot_ok, jnp.concatenate([x[1:, :], z], axis=0), 0.0)   # row h+1
        acc = jnp.dot(x_up.astype(jnp.bfloat16), a_ref[0],
                      preferred_element_type=jnp.float32)
        acc += jnp.dot(x.astype(jnp.bfloat16), a_ref[1],
                       preferred_element_type=jnp.float32)
        acc += jnp.dot(x_dn.astype(jnp.bfloat16), a_ref[2],
                       preferred_element_type=jnp.float32)
        return acc                   # (B*H, W*Cout) f32

    def bn_relu(c, gamma_row, beta_row):
        # Fused BN: one pass for sum / sum-of-squares; per-channel totals via
        # log2(W) channel-aligned lane rotations (direction-agnostic).
        s = jnp.sum(c, axis=0, keepdims=True)
        ss = jnp.sum(c * c, axis=0, keepdims=True)
        stats = jnp.concatenate([s, ss], axis=0)          # (2, W*Cout)
        step = Cout
        while step < WCout:
            stats = stats + pltpu.roll(stats, step, axis=1)
            step *= 2
        mean = stats[0:1, :] * (1.0 / n_red)
        var = stats[1:2, :] * (1.0 / n_red) - mean * mean
        scale = gamma_row * lax.rsqrt(var + EPS)
        shift = beta_row - mean * scale
        return jnp.maximum(c * scale + shift, 0.0)

    h1 = bn_relu(conv3x3(x_ref[...], a1_ref), gb[0:1, :], gb[1:2, :])
    h2 = bn_relu(conv3x3(h1, a2_ref), gb[2:3, :], gb[3:4, :])

    # 2x2 average pool: two shifted adds (VPU).  Valid pooled values land at
    # even (h, w) positions; the wrapper compacts them with a strided slice.
    zr = jnp.zeros((1, WCout), jnp.float32)
    hp = h2 + jnp.concatenate([h2[1:, :], zr], axis=0)                # rows h, h+1
    zc = jnp.zeros((BH, Cout), jnp.float32)
    wp = hp + jnp.concatenate([hp[:, Cout:], zc], axis=1)             # cols w, w+1
    o_ref[...] = 0.25 * wp


def _expand_conv_weight(w_oihw, W):
    # (Cout, Cin, 3, 3) -> (3, W*Cin, W*Cout) bf16.  For each kh tap, a matrix
    # applying all three kw taps (and the zero padding in W) to a (w, c)-folded row:
    #   A_kh[(w_out + kw - 1)*Cin + c, w_out*Cout + co] = w[co, c, kh, kw]
    mats = []
    for kh in range(3):
        a = None
        for kw in range(3):
            sel = jnp.eye(W, k=-(kw - 1), dtype=jnp.float32)   # w_in = w_out + (kw-1)
            blk = jnp.kron(sel, w_oihw[:, :, kh, kw].T.astype(jnp.float32))
            a = blk if a is None else a + blk
        mats.append(a)
    return jnp.stack(mats).astype(jnp.bfloat16)


def conv_block_forward(x_nchw, w1_oihw, w2_oihw, gamma1, beta1, gamma2, beta2,
                       pool_size=(2, 2), pool_type='avg'):
    # TODO(synk): only pool_type='avg' (the default) and pool_size=(2,2) are
    #             implemented in the kernel ('max' / 'avg+max' not needed here).
    assert pool_type == 'avg' and tuple(pool_size) == (2, 2)

    B, Cin, H, W = x_nchw.shape
    Cout = w1_oihw.shape[0]
    assert W > 0 and (W & (W - 1)) == 0, "W must be a power of two (lane reduce)"
    assert H % 2 == 0 and W % 2 == 0

    # Lane-dense activation slab: rows = (b, h), lanes = (w, cin).
    x_slab = jnp.transpose(x_nchw, (0, 2, 3, 1)).reshape(B * H, W * Cin)
    x_slab = x_slab.astype(jnp.float32)

    a1 = _expand_conv_weight(w1_oihw, W)                  # (3, W*Cin,  W*Cout) bf16
    a2 = _expand_conv_weight(w2_oihw, W)                  # (3, W*Cout, W*Cout) bf16
    gb = jnp.stack([jnp.tile(gamma1.astype(jnp.float32), W),
                    jnp.tile(beta1.astype(jnp.float32), W),
                    jnp.tile(gamma2.astype(jnp.float32), W),
                    jnp.tile(beta2.astype(jnp.float32), W)])   # (4, W*Cout) f32

    kernel = functools.partial(_convblock_kernel, H=H, W=W, Cout=Cout)
    out_slab = pl.pallas_call(
        kernel,
        out_shape=jax.ShapeDtypeStruct((B * H, W * Cout), jnp.float32),
        grid_spec=pltpu.PrefetchScalarGridSpec(
            num_scalar_prefetch=0,
            # TODO(synk): grid=(1,) because training-mode BN needs global batch
            #             stats; at production sizes tile over batch with stat
            #             accumulators + a pl.when finalize pass (and a parallel
            #             axis so v7x's two TensorCores both get work).
            grid=(1,),
            in_specs=[
                pl.BlockSpec((B * H, W * Cin), lambda i: (0, 0)),
                pl.BlockSpec((3, W * Cin, W * Cout), lambda i: (0, 0, 0)),
                pl.BlockSpec((3, W * Cout, W * Cout), lambda i: (0, 0, 0)),
                pl.BlockSpec((4, W * Cout), lambda i: (0, 0)),
            ],
            out_specs=pl.BlockSpec((B * H, W * Cout), lambda i: (0, 0)),
        ),
        compiler_params=pltpu.CompilerParams(dimension_semantics=("arbitrary",)),
    )(x_slab, a1, a2, gb)

    # Layout plumbing: pooled values sit at even (h, w); select + back to NCHW.
    out = out_slab.reshape(B, H, W, Cout)[:, ::2, ::2, :]
    return jnp.transpose(out, (0, 3, 1, 2))


def conv_block_reference(x, w1, w2, g1, b1, g2, b2):
    def bn_relu(y, g, bta):
        mu = y.mean(axis=(0, 2, 3), keepdims=True)
        var = ((y - mu) ** 2).mean(axis=(0, 2, 3), keepdims=True)
        yhat = (y - mu) * lax.rsqrt(var + EPS)
        return jnp.maximum(yhat * g.reshape(1, -1, 1, 1) + bta.reshape(1, -1, 1, 1),
                           0.0)

    y = lax.conv_general_dilated(x, w1, (1, 1), ((1, 1), (1, 1)),
                                 dimension_numbers=('NCHW', 'OIHW', 'NCHW'))
    y = bn_relu(y, g1, b1)
    y = lax.conv_general_dilated(y, w2, (1, 1), ((1, 1), (1, 1)),
                                 dimension_numbers=('NCHW', 'OIHW', 'NCHW'))
    y = bn_relu(y, g2, b2)
    B, C, H, W = y.shape
    return y.reshape(B, C, H // 2, 2, W // 2, 2).mean(axis=(3, 5))


if __name__ == "__main__":
    key = jax.random.PRNGKey(0)
    k1, k2, k3 = jax.random.split(key, 3)
    B, Cin, Cout, H, W = 2, 4, 8, 16, 16

    x = jax.random.normal(k1, (B, Cin, H, W), jnp.float32)
    # Deterministic Xavier-ish conv init (bias=False per the module).
    w1 = jax.random.normal(k2, (Cout, Cin, 3, 3), jnp.float32) / np.sqrt(Cin * 9)
    w2 = jax.random.normal(k3, (Cout, Cout, 3, 3), jnp.float32) / np.sqrt(Cout * 9)
    # init_bn: weight=1, bias=0
    g1 = jnp.ones((Cout,), jnp.float32)
    b1 = jnp.zeros((Cout,), jnp.float32)
    g2 = jnp.ones((Cout,), jnp.float32)
    b2 = jnp.zeros((Cout,), jnp.float32)

    out = conv_block_forward(x, w1, w2, g1, b1, g2, b2)
    out = jax.block_until_ready(out)

    ref = conv_block_reference(x, w1, w2, g1, b1, g2, b2)
    assert out.shape == (B, Cout, H // 2, W // 2)
    # Tolerance accounts for bf16 matmul operands (f32 accumulation) vs the f32 reference.
    np.testing.assert_allclose(np.asarray(out), np.asarray(ref), atol=2e-2, rtol=2e-2)
    print("KERNEL_OK")
</pallas_src>

<mosaic_0001>
module attributes {stable_mosaic.version = 11 : i64} {
  func.func @_convblock_kernel(%arg0: i32, %arg1: memref<32x64xf32, #tpu.memory_space<vmem>>, %arg2: memref<3x64x128xbf16, #tpu.memory_space<vmem>>, %arg3: memref<3x128x128xbf16, #tpu.memory_space<vmem>>, %arg4: memref<4x128xf32, #tpu.memory_space<vmem>>, %arg5: memref<32x128xf32, #tpu.memory_space<vmem>>) attributes {dimension_semantics = [#tpu.dimension_semantics<arbitrary>], iteration_bounds = array<i64: 1>, scalar_prefetch = 0 : i64, scratch_operands = 0 : i64, tpu.core_type = #tpu.core_type<tc>, window_params = [{pipeline_mode = #tpu.pipeline_mode<synchronous>, transform_indices = @transform_0, window_bounds = array<i64: 32, 64>}, {pipeline_mode = #tpu.pipeline_mode<synchronous>, transform_indices = @transform_1, window_bounds = array<i64: 3, 64, 128>}, {pipeline_mode = #tpu.pipeline_mode<synchronous>, transform_indices = @transform_2, window_bounds = array<i64: 3, 128, 128>}, {pipeline_mode = #tpu.pipeline_mode<synchronous>, transform_indices = @transform_3, window_bounds = array<i64: 4, 128>}, {pipeline_mode = #tpu.pipeline_mode<synchronous>, transform_indices = @transform_4, window_bounds = array<i64: 32, 128>}]} {
    %0 = tpu.iota {dimensions = array<i32: 0>} : vector<32x1xi32>
    %c16_i32 = arith.constant 16 : i32
    %c0_i32 = arith.constant 0 : i32
    %1 = arith.cmpi eq, %c16_i32, %c0_i32 : i32
    %c1_i32 = arith.constant 1 : i32
    %2 = arith.select %1, %c1_i32, %c16_i32 : i32
    %3 = vector.broadcast %2 : i32 to vector<32x1xi32>
    %4 = arith.remsi %0, %3 : vector<32x1xi32>
    %c0_i32_0 = arith.constant 0 : i32
    %5 = vector.broadcast %c0_i32_0 : i32 to vector<32x1xi32>
    %6 = arith.cmpi ne, %4, %5 : vector<32x1xi32>
    %c0_i32_1 = arith.constant 0 : i32
    %7 = vector.broadcast %c0_i32_1 : i32 to vector<32x1xi32>
    %8 = arith.cmpi slt, %4, %7 : vector<32x1xi32>
    %c0_i32_2 = arith.constant 0 : i32
    %9 = arith.cmpi slt, %2, %c0_i32_2 : i32
    %10 = vector.broadcast %9 : i1 to vector<32x1xi1>
    %11 = vector.broadcast %10 : vector<32x1xi1> to vector<32x1xi1>
    %12 = arith.xori %8, %11 : vector<32x1xi1>
    %13 = arith.andi %12, %6 : vector<32x1xi1>
    %14 = vector.broadcast %2 : i32 to vector<32x1xi32>
    %15 = arith.addi %4, %14 : vector<32x1xi32>
    %16 = arith.select %13, %15, %4 : vector<32x1xi1>, vector<32x1xi32>
    %c0_i32_3 = arith.constant 0 : i32
    %17 = vector.broadcast %c0_i32_3 : i32 to vector<32x1xi32>
    %18 = arith.cmpi sgt, %16, %17 : vector<32x1xi32>
    %c15_i32 = arith.constant 15 : i32
    %19 = vector.broadcast %c15_i32 : i32 to vector<32x1xi32>
    %20 = arith.cmpi slt, %16, %19 : vector<32x1xi32>
    %c0 = arith.constant 0 : index
    %c0_4 = arith.constant 0 : index
    %21 = vector.load %arg4[%c0, %c0_4] : memref<4x128xf32, #tpu.memory_space<vmem>>, vector<4x128xf32>
    %c0_5 = arith.constant 0 : index
    %c0_6 = arith.constant 0 : index
    %22 = vector.load %arg1[%c0_5, %c0_6] : memref<32x64xf32, #tpu.memory_space<vmem>>, vector<32x64xf32>
    %cst = arith.constant 0.000000e+00 : f32
    %23 = vector.broadcast %cst : f32 to vector<1x64xf32>
    %24 = vector.extract_strided_slice %22 {offsets = [0, 0], sizes = [31, 64], strides = [1, 1]} : vector<32x64xf32> to vector<31x64xf32>
    %25 = tpu.concatenate %23, %24 in 0 : vector<1x64xf32>, vector<31x64xf32> -> vector<32x64xf32>
    %cst_7 = arith.constant 0.000000e+00 : f32
    %26 = vector.shape_cast %18 : vector<32x1xi1> to vector<32x1xi1>
    %27 = vector.broadcast %26 : vector<32x1xi1> to vector<32x64xi1>
    %28 = vector.broadcast %cst_7 : f32 to vector<32x64xf32>
    %29 = arith.select %27, %25, %28 : vector<32x64xi1>, vector<32x64xf32>
    %30 = vector.extract_strided_slice %22 {offsets = [1, 0], sizes = [31, 64], strides = [1, 1]} : vector<32x64xf32> to vector<31x64xf32>
    %31 = tpu.concatenate %30, %23 in 0 : vector<31x64xf32>, vector<1x64xf32> -> vector<32x64xf32>
    %cst_8 = arith.constant 0.000000e+00 : f32
    %32 = vector.shape_cast %20 : vector<32x1xi1> to vector<32x1xi1>
    %33 = vector.broadcast %32 : vector<32x1xi1> to vector<32x64xi1>
    %34 = vector.broadcast %cst_8 : f32 to vector<32x64xf32>
    %35 = arith.select %33, %31, %34 : vector<32x64xi1>, vector<32x64xf32>
    %36 = arith.truncf %29 : vector<32x64xf32> to vector<32x64xbf16>
    %c0_9 = arith.constant 0 : index
    %c0_10 = arith.constant 0 : index
    %c0_11 = arith.constant 0 : index
    %37 = vector.load %arg2[%c0_9, %c0_10, %c0_11] : memref<3x64x128xbf16, #tpu.memory_space<vmem>>, vector<1x64x128xbf16>
    %38 = vector.shape_cast %37 : vector<1x64x128xbf16> to vector<64x128xbf16>
    %cst_12 = arith.constant dense<0.000000e+00> : vector<32x128xf32>
    %39 = tpu.matmul %36, %38, %cst_12 {dimension_numbers = #tpu.dot_dimension_numbers<[1], [0], [0], [1], [0, 0, 1, 1], [], []>} : vector<32x64xbf16>, vector<64x128xbf16>, vector<32x128xf32> -> vector<32x128xf32>
    %40 = arith.truncf %22 : vector<32x64xf32> to vector<32x64xbf16>
    %c1 = arith.constant 1 : index
    %c0_13 = arith.constant 0 : index
    %c0_14 = arith.constant 0 : index
    %41 = vector.load %arg2[%c1, %c0_13, %c0_14] : memref<3x64x128xbf16, #tpu.memory_space<vmem>>, vector<1x64x128xbf16>
    %42 = vector.shape_cast %41 : vector<1x64x128xbf16> to vector<64x128xbf16>
    %cst_15 = arith.constant dense<0.000000e+00> : vector<32x128xf32>
    %43 = tpu.matmul %40, %42, %cst_15 {dimension_numbers = #tpu.dot_dimension_numbers<[1], [0], [0], [1], [0, 0, 1, 1], [], []>} : vector<32x64xbf16>, vector<64x128xbf16>, vector<32x128xf32> -> vector<32x128xf32>
    %44 = arith.addf %39, %43 : vector<32x128xf32>
    %45 = arith.truncf %35 : vector<32x64xf32> to vector<32x64xbf16>
    %c2 = arith.constant 2 : index
    %c0_16 = arith.constant 0 : index
    %c0_17 = arith.constant 0 : index
    %46 = vector.load %arg2[%c2, %c0_16, %c0_17] : memref<3x64x128xbf16, #tpu.memory_space<vmem>>, vector<1x64x128xbf16>
    %47 = vector.shape_cast %46 : vector<1x64x128xbf16> to vector<64x128xbf16>
    %cst_18 = arith.constant dense<0.000000e+00> : vector<32x128xf32>
    %48 = tpu.matmul %45, %47, %cst_18 {dimension_numbers = #tpu.dot_dimension_numbers<[1], [0], [0], [1], [0, 0, 1, 1], [], []>} : vector<32x64xbf16>, vector<64x128xbf16>, vector<32x128xf32> -> vector<32x128xf32>
    %49 = arith.addf %44, %48 : vector<32x128xf32>
    %50 = vector.extract_strided_slice %21 {offsets = [0, 0], sizes = [1, 128], strides = [1, 1]} : vector<4x128xf32> to vector<1x128xf32>
    %51 = vector.extract_strided_slice %21 {offsets = [1, 0], sizes = [1, 128], strides = [1, 1]} : vector<4x128xf32> to vector<1x128xf32>
    %cst_19 = arith.constant dense<0.000000e+00> : vector<128xf32>
    %52 = vector.multi_reduction <add>, %49, %cst_19 [0] : vector<32x128xf32> to vector<128xf32>
    %53 = vector.shape_cast %52 : vector<128xf32> to vector<1x128xf32>
    %54 = arith.mulf %49, %49 : vector<32x128xf32>
    %cst_20 = arith.constant dense<0.000000e+00> : vector<128xf32>
    %55 = vector.multi_reduction <add>, %54, %cst_20 [0] : vector<32x128xf32> to vector<128xf32>
    %56 = vector.shape_cast %55 : vector<128xf32> to vector<1x128xf32>
    %57 = tpu.concatenate %53, %56 in 0 : vector<1x128xf32>, vector<1x128xf32> -> vector<2x128xf32>
    %c8_i32 = arith.constant 8 : i32
    %58 = tpu.dynamic_rotate %57 by %c8_i32 dim 1 : vector<2x128xf32>, i32 -> vector<2x128xf32>
    %59 = arith.addf %57, %58 : vector<2x128xf32>
    %c16_i32_21 = arith.constant 16 : i32
    %60 = tpu.dynamic_rotate %59 by %c16_i32_21 dim 1 : vector<2x128xf32>, i32 -> vector<2x128xf32>
    %61 = arith.addf %59, %60 : vector<2x128xf32>
    %c32_i32 = arith.constant 32 : i32
    %62 = tpu.dynamic_rotate %61 by %c32_i32 dim 1 : vector<2x128xf32>, i32 -> vector<2x128xf32>
    %63 = arith.addf %61, %62 : vector<2x128xf32>
    %c64_i32 = arith.constant 64 : i32
    %64 = tpu.dynamic_rotate %63 by %c64_i32 dim 1 : vector<2x128xf32>, i32 -> vector<2x128xf32>
    %65 = arith.addf %63, %64 : vector<2x128xf32>
    %66 = vector.extract_strided_slice %65 {offsets = [0, 0], sizes = [1, 128], strides = [1, 1]} : vector<2x128xf32> to vector<1x128xf32>
    %cst_22 = arith.constant 0.001953125 : f32
    %67 = vector.broadcast %cst_22 : f32 to vector<1x128xf32>
    %68 = arith.mulf %66, %67 : vector<1x128xf32>
    %69 = vector.extract_strided_slice %65 {offsets = [1, 0], sizes = [1, 128], strides = [1, 1]} : vector<2x128xf32> to vector<1x128xf32>
    %cst_23 = arith.constant 0.001953125 : f32
    %70 = vector.broadcast %cst_23 : f32 to vector<1x128xf32>
    %71 = arith.mulf %69, %70 : vector<1x128xf32>
    %72 = arith.mulf %68, %68 : vector<1x128xf32>
    %73 = arith.subf %71, %72 : vector<1x128xf32>
    %cst_24 = arith.constant 9.99999974E-6 : f32
    %74 = vector.broadcast %cst_24 : f32 to vector<1x128xf32>
    %75 = arith.addf %73, %74 : vector<1x128xf32>
    %76 = math.rsqrt %75 : vector<1x128xf32>
    %77 = arith.mulf %50, %76 : vector<1x128xf32>
    %78 = arith.mulf %68, %77 : vector<1x128xf32>
    %79 = arith.subf %51, %78 : vector<1x128xf32>
    %80 = vector.broadcast %77 : vector<1x128xf32> to vector<32x128xf32>
    %81 = arith.mulf %49, %80 : vector<32x128xf32>
    %82 = vector.broadcast %79 : vector<1x128xf32> to vector<32x128xf32>
    %83 = arith.addf %81, %82 : vector<32x128xf32>
    %cst_25 = arith.constant 0.000000e+00 : f32
    %84 = vector.broadcast %cst_25 : f32 to vector<32x128xf32>
    %85 = arith.maximumf %83, %84 : vector<32x128xf32>
    %cst_26 = arith.constant 0.000000e+00 : f32
    %86 = vector.broadcast %cst_26 : f32 to vector<1x128xf32>
    %87 = vector.extract_strided_slice %85 {offsets = [0, 0], sizes = [31, 128], strides = [1, 1]} : vector<32x128xf32> to vector<31x128xf32>
    %88 = tpu.concatenate %86, %87 in 0 : vector<1x128xf32>, vector<31x128xf32> -> vector<32x128xf32>
    %cst_27 = arith.constant 0.000000e+00 : f32
    %89 = vector.shape_cast %18 : vector<32x1xi1> to vector<32x1xi1>
    %90 = vector.broadcast %89 : vector<32x1xi1> to vector<32x128xi1>
    %91 = vector.broadcast %cst_27 : f32 to vector<32x128xf32>
    %92 = arith.select %90, %88, %91 : vector<32x128xi1>, vector<32x128xf32>
    %93 = vector.extract_strided_slice %85 {offsets = [1, 0], sizes = [31, 128], strides = [1, 1]} : vector<32x128xf32> to vector<31x128xf32>
    %94 = tpu.concatenate %93, %86 in 0 : vector<31x128xf32>, vector<1x128xf32> -> vector<32x128xf32>
    %cst_28 = arith.constant 0.000000e+00 : f32
    %95 = vector.shape_cast %20 : vector<32x1xi1> to vector<32x1xi1>
    %96 = vector.broadcast %95 : vector<32x1xi1> to vector<32x128xi1>
    %97 = vector.broadcast %cst_28 : f32 to vector<32x128xf32>
    %98 = arith.select %96, %94, %97 : vector<32x128xi1>, vector<32x128xf32>
    %99 = arith.truncf %92 : vector<32x128xf32> to vector<32x128xbf16>
    %c0_29 = arith.constant 0 : index
    %c0_30 = arith.constant 0 : index
    %c0_31 = arith.constant 0 : index
    %100 = vector.load %arg3[%c0_29, %c0_30, %c0_31] : memref<3x128x128xbf16, #tpu.memory_space<vmem>>, vector<1x128x128xbf16>
    %101 = vector.shape_cast %100 : vector<1x128x128xbf16> to vector<128x128xbf16>
    %cst_32 = arith.constant dense<0.000000e+00> : vector<32x128xf32>
    %102 = tpu.matmul %99, %101, %cst_32 {dimension_numbers = #tpu.dot_dimension_numbers<[1], [0], [0], [1], [0, 0, 1, 1], [], []>} : vector<32x128xbf16>, vector<128x128xbf16>, vector<32x128xf32> -> vector<32x128xf32>
    %103 = arith.truncf %85 : vector<32x128xf32> to vector<32x128xbf16>
    %c1_33 = arith.constant 1 : index
    %c0_34 = arith.constant 0 : index
    %c0_35 = arith.constant 0 : index
    %104 = vector.load %arg3[%c1_33, %c0_34, %c0_35] : memref<3x128x128xbf16, #tpu.memory_space<vmem>>, vector<1x128x128xbf16>
    %105 = vector.shape_cast %104 : vector<1x128x128xbf16> to vector<128x128xbf16>
    %cst_36 = arith.constant dense<0.000000e+00> : vector<32x128xf32>
    %106 = tpu.matmul %103, %105, %cst_36 {dimension_numbers = #tpu.dot_dimension_numbers<[1], [0], [0], [1], [0, 0, 1, 1], [], []>} : vector<32x128xbf16>, vector<128x128xbf16>, vector<32x128xf32> -> vector<32x128xf32>
    %107 = arith.addf %102, %106 : vector<32x128xf32>
    %108 = arith.truncf %98 : vector<32x128xf32> to vector<32x128xbf16>
    %c2_37 = arith.constant 2 : index
    %c0_38 = arith.constant 0 : index
    %c0_39 = arith.constant 0 : index
    %109 = vector.load %arg3[%c2_37, %c0_38, %c0_39] : memref<3x128x128xbf16, #tpu.memory_space<vmem>>, vector<1x128x128xbf16>
    %110 = vector.shape_cast %109 : vector<1x128x128xbf16> to vector<128x128xbf16>
    %cst_40 = arith.constant dense<0.000000e+00> : vector<32x128xf32>
    %111 = tpu.matmul %108, %110, %cst_40 {dimension_numbers = #tpu.dot_dimension_numbers<[1], [0], [0], [1], [0, 0, 1, 1], [], []>} : vector<32x128xbf16>, vector<128x128xbf16>, vector<32x128xf32> -> vector<32x128xf32>
    %112 = arith.addf %107, %111 : vector<32x128xf32>
    %113 = vector.extract_strided_slice %21 {offsets = [2, 0], sizes = [1, 128], strides = [1, 1]} : vector<4x128xf32> to vector<1x128xf32>
    %114 = vector.extract_strided_slice %21 {offsets = [3, 0], sizes = [1, 128], strides = [1, 1]} : vector<4x128xf32> to vector<1x128xf32>
    %cst_41 = arith.constant dense<0.000000e+00> : vector<128xf32>
    %115 = vector.multi_reduction <add>, %112, %cst_41 [0] : vector<32x128xf32> to vector<128xf32>
    %116 = vector.shape_cast %115 : vector<128xf32> to vector<1x128xf32>
    %117 = arith.mulf %112, %112 : vector<32x128xf32>
    %cst_42 = arith.constant dense<0.000000e+00> : vector<128xf32>
    %118 = vector.multi_reduction <add>, %117, %cst_42 [0] : vector<32x128xf32> to vector<128xf32>
    %119 = vector.shape_cast %118 : vector<128xf32> to vector<1x128xf32>
    %120 = tpu.concatenate %116, %119 in 0 : vector<1x128xf32>, vector<1x128xf32> -> vector<2x128xf32>
    %c8_i32_43 = arith.constant 8 : i32
    %121 = tpu.dynamic_rotate %120 by %c8_i32_43 dim 1 : vector<2x128xf32>, i32 -> vector<2x128xf32>
    %122 = arith.addf %120, %121 : vector<2x128xf32>
    %c16_i32_44 = arith.constant 16 : i32
    %123 = tpu.dynamic_rotate %122 by %c16_i32_44 dim 1 : vector<2x128xf32>, i32 -> vector<2x128xf32>
    %124 = arith.addf %122, %123 : vector<2x128xf32>
    %c32_i32_45 = arith.constant 32 : i32
    %125 = tpu.dynamic_rotate %124 by %c32_i32_45 dim 1 : vector<2x128xf32>, i32 -> vector<2x128xf32>
    %126 = arith.addf %124, %125 : vector<2x128xf32>
    %c64_i32_46 = arith.constant 64 : i32
    %127 = tpu.dynamic_rotate %126 by %c64_i32_46 dim 1 : vector<2x128xf32>, i32 -> vector<2x128xf32>
    %128 = arith.addf %126, %127 : vector<2x128xf32>
    %129 = vector.extract_strided_slice %128 {offsets = [0, 0], sizes = [1, 128], strides = [1, 1]} : vector<2x128xf32> to vector<1x128xf32>
    %cst_47 = arith.constant 0.001953125 : f32
    %130 = vector.broadcast %cst_47 : f32 to vector<1x128xf32>
    %131 = arith.mulf %129, %130 : vector<1x128xf32>
    %132 = vector.extract_strided_slice %128 {offsets = [1, 0], sizes = [1, 128], strides = [1, 1]} : vector<2x128xf32> to vector<1x128xf32>
    %cst_48 = arith.constant 0.001953125 : f32
    %133 = vector.broadcast %cst_48 : f32 to vector<1x128xf32>
    %134 = arith.mulf %132, %133 : vector<1x128xf32>
    %135 = arith.mulf %131, %131 : vector<1x128xf32>
    %136 = arith.subf %134, %135 : vector<1x128xf32>
    %cst_49 = arith.constant 9.99999974E-6 : f32
    %137 = vector.broadcast %cst_49 : f32 to vector<1x128xf32>
    %138 = arith.addf %136, %137 : vector<1x128xf32>
    %139 = math.rsqrt %138 : vector<1x128xf32>
    %140 = arith.mulf %113, %139 : vector<1x128xf32>
    %141 = arith.mulf %131, %140 : vector<1x128xf32>
    %142 = arith.subf %114, %141 : vector<1x128xf32>
    %143 = vector.broadcast %140 : vector<1x128xf32> to vector<32x128xf32>
    %144 = arith.mulf %112, %143 : vector<32x128xf32>
    %145 = vector.broadcast %142 : vector<1x128xf32> to vector<32x128xf32>
    %146 = arith.addf %144, %145 : vector<32x128xf32>
    %cst_50 = arith.constant 0.000000e+00 : f32
    %147 = vector.broadcast %cst_50 : f32 to vector<32x128xf32>
    %148 = arith.maximumf %146, %147 : vector<32x128xf32>
    %cst_51 = arith.constant 0.000000e+00 : f32
    %149 = vector.broadcast %cst_51 : f32 to vector<1x128xf32>
    %150 = vector.extract_strided_slice %148 {offsets = [1, 0], sizes = [31, 128], strides = [1, 1]} : vector<32x128xf32> to vector<31x128xf32>
    %151 = tpu.concatenate %150, %149 in 0 : vector<31x128xf32>, vector<1x128xf32> -> vector<32x128xf32>
    %152 = arith.addf %148, %151 : vector<32x128xf32>
    %cst_52 = arith.constant 0.000000e+00 : f32
    %153 = vector.broadcast %cst_52 : f32 to vector<32x8xf32>
    %154 = vector.extract_strided_slice %152 {offsets = [0, 8], sizes = [32, 120], strides = [1, 1]} : vector<32x128xf32> to vector<32x120xf32>
    %155 = tpu.concatenate %154, %153 in 1 : vector<32x120xf32>, vector<32x8xf32> -> vector<32x128xf32>
    %156 = arith.addf %152, %155 : vector<32x128xf32>
    %cst_53 = arith.constant 2.500000e-01 : f32
    %157 = vector.broadcast %cst_53 : f32 to vector<32x128xf32>
    %158 = arith.mulf %157, %156 : vector<32x128xf32>
    %c0_54 = arith.constant 0 : index
    %c0_55 = arith.constant 0 : index
    %159 = vector.load %arg5[%c0_54, %c0_55] : memref<32x128xf32, #tpu.memory_space<vmem>>, vector<32x128xf32>
    tpu.vector_store %arg5[%c0_54, %c0_55], %158 {strides = array<i32>} : memref<32x128xf32, #tpu.memory_space<vmem>>, vector<32x128xf32>,
    return
  }
  func.func @transform_0(%arg0: i32) -> (i32, i32) {
    %c0_i32 = arith.constant 0 : i32
    %c0_i32_0 = arith.constant 0 : i32
    %c0_i32_1 = arith.constant 0 : i32
    return %c0_i32, %c0_i32_0 : i32, i32
  }
  func.func @transform_1(%arg0: i32) -> (i32, i32, i32) {
    %c0_i32 = arith.constant 0 : i32
    %c0_i32_0 = arith.constant 0 : i32
    %c0_i32_1 = arith.constant 0 : i32
    %c0_i32_2 = arith.constant 0 : i32
    return %c0_i32, %c0_i32_0, %c0_i32_1 : i32, i32, i32
  }
  func.func @transform_2(%arg0: i32) -> (i32, i32, i32) {
    %c0_i32 = arith.constant 0 : i32
    %c0_i32_0 = arith.constant 0 : i32
    %c0_i32_1 = arith.constant 0 : i32
    %c0_i32_2 = arith.constant 0 : i32
    return %c0_i32, %c0_i32_0, %c0_i32_1 : i32, i32, i32
  }
  func.func @transform_3(%arg0: i32) -> (i32, i32) {
    %c0_i32 = arith.constant 0 : i32
    %c0_i32_0 = arith.constant 0 : i32
    %c0_i32_1 = arith.constant 0 : i32
    return %c0_i32, %c0_i32_0 : i32, i32
  }
  func.func @transform_4(%arg0: i32) -> (i32, i32) {
    %c0_i32 = arith.constant 0 : i32
    %c0_i32_0 = arith.constant 0 : i32
    %c0_i32_1 = arith.constant 0 : i32
    return %c0_i32, %c0_i32_0 : i32, i32
  }
}

</mosaic_0001>

<llo_original>
// kernel: tpu_custom_call.1
$region0: #{tpu_custom_call.1}
  #allocation0 [shape = 'u32[]', space=smem, size = 0x4, offset = 0x4, fixed_abs, tag = 'smem constant byte address 0x4 - core index']
  #allocation1 [shape = 'u32[144,128]{1,0:T(1,128)}', space=vmem, size = 0x12000, scoped, tag = 'internal scratch']
  %s0 = inlined_call_operand.hbm [shape: f32[32,64], index: 0, kind: input, shape index: {}]
  %s1 = inlined_call_operand.hbm [shape: bf16[3,64,128], index: 1, kind: input, shape index: {}]
  %s2 = inlined_call_operand.hbm [shape: bf16[3,128,128], index: 2, kind: input, shape index: {}]
  %s3 = inlined_call_operand.vmem [shape: f32[4,128], index: 3, kind: input, shape index: {}]
  %s4 = inlined_call_operand.hbm [shape: f32[32,128], index: 4, kind: output, shape index: {}]
  %s5 = sld [smem:[#allocation0]]
  $region38: #{tpu_custom_call.1} parent=0
    _
  %s7 = ssub.s32 1, %s5
  %s8 = scalar_select 0, %s7, %s5
  $region1: #{tpu_custom_call.1} parent=0
    #allocation2 [shape = 'u8[16384]{0}', space=vmem, size = 0x4000, scoped, tag = 'input window, operand 0, single buffered']
    #allocation3 [shape = 's32[1]{0}', space=sflag, size = 0x4, scoped, tag = 'scoped memory for tpu_custom_call.1']
    #allocation4 [shape = 's32[1]{0}', space=sflag, size = 0x4, scoped, tag = 'scoped memory for tpu_custom_call.1']
    #allocation5 [shape = 'u8[49152]{0}', space=vmem, size = 0xc000, scoped, tag = 'input window, operand 1, single buffered']
    #allocation6 [shape = 's32[1]{0}', space=sflag, size = 0x4, scoped, tag = 'scoped memory for tpu_custom_call.1']
    #allocation7 [shape = 'u8[98304]{0}', space=vmem, size = 0x18000, scoped, tag = 'input window, operand 2, single buffered']
    #allocation8 [shape = 'u8[16384]{0}', space=vmem, size = 0x4000, scoped, tag = 'output window, operand 0, single buffered']
    %9 = vsyncpa [#allocation3], 0
    %10 = vsyncpa [#allocation6], 0
    %11 = vsyncpa [#allocation4], 0
    // Predicated region
    $region2: #{tpu_custom_call.1} parent=1 // pred_check
      _
    $region3: #{tpu_custom_call.1} parent=1 // pred_check_branch
      %13 = sbr.rel (0) target = $region5
    $region4: #{tpu_custom_call.1} parent=1 // pred_region
      %s15 = ssub.s32 512, 512
      %16 = vsyncadd [#allocation3], %s15
      %s17 = sshll.u32 [#allocation2], 4
      %s18 = int_to_ptr.vmem [resolvable:$true] %s17
      %23 = dma.hbm_to_vmem [thread:$0]  %s0, 512, %s18, [#allocation3], 128, 128, 8
    $region5: #{tpu_custom_call.1} parent=1 // pred_fallthru
      _
    // Predicated region
    $region6: #{tpu_custom_call.1} parent=1 // pred_check
      _
    $region7: #{tpu_custom_call.1} parent=1 // pred_check_branch
      %25 = sbr.rel (0) target = $region9
    $region8: #{tpu_custom_call.1} parent=1 // pred_region
      %s27 = ssub.s32 1536, 1536
      %28 = vsyncadd [#allocation6], %s27
      %s29 = sshll.u32 [#allocation5], 4
      %s30 = int_to_ptr.vmem [resolvable:$true] %s29
      %35 = dma.hbm_to_vmem [thread:$0]  %s1, 1536, %s30, [#allocation6], 64, 64, 4
    $region9: #{tpu_custom_call.1} parent=1 // pred_fallthru
      _
    // Predicated region
    $region10: #{tpu_custom_call.1} parent=1 // pred_check
      _
    $region11: #{tpu_custom_call.1} parent=1 // pred_check_branch
      %37 = sbr.rel (0) target = $region13
    $region12: #{tpu_custom_call.1} parent=1 // pred_region
      %s39 = ssub.s32 3072, 3072
      %40 = vsyncadd [#allocation6], %s39
      %s41 = sshll.u32 [#allocation7], 4
      %s42 = int_to_ptr.vmem [resolvable:$true] %s41
      %47 = dma.hbm_to_vmem [thread:$0]  %s2, 3072, %s42, [#allocation6], 64, 64, 4
    $region13: #{tpu_custom_call.1} parent=1 // pred_fallthru
      _
    // Predicated region
    $region14: #{tpu_custom_call.1} parent=1 // pred_check
      _
    $region15: #{tpu_custom_call.1} parent=1 // pred_check_branch
      %49 = sbr.rel (0) target = $region17
    $region16: #{tpu_custom_call.1} parent=1 // pred_region
      _
    $region17: #{tpu_custom_call.1} parent=1 // pred_fallthru
      _
    // Predicated region
    $region18: #{tpu_custom_call.1} parent=1 // pred_check
      _
    $region19: #{tpu_custom_call.1} parent=1 // pred_check_branch
      %51 = sbr.rel (0) target = $region21
    $region20: #{tpu_custom_call.1} parent=1 // pred_region
      %52 = dma.done [#allocation3], 512
    $region21: #{tpu_custom_call.1} parent=1 // pred_fallthru
      _
    // Predicated region
    $region22: #{tpu_custom_call.1} parent=1 // pred_check
      _
    $region23: #{tpu_custom_call.1} parent=1 // pred_check_branch
      %54 = sbr.rel (0) target = $region25
    $region24: #{tpu_custom_call.1} parent=1 // pred_region
      %55 = dma.done [#allocation6], 1536
    $region25: #{tpu_custom_call.1} parent=1 // pred_fallthru
      _
    // Predicated region
    $region26: #{tpu_custom_call.1} parent=1 // pred_check
      _
    $region27: #{tpu_custom_call.1} parent=1 // pred_check_branch
      %57 = sbr.rel (0) target = $region29
    $region28: #{tpu_custom_call.1} parent=1 // pred_region
      %58 = dma.done [#allocation6], 3072
    $region29: #{tpu_custom_call.1} parent=1 // pred_fallthru
      _
    %v60 = vlaneseq
    %v61 = vshrl.u32 %v60, 7
    %v62 = vadd.s32 %v61, 8
    %v63 = vadd.s32 %v61, 16
    %v64 = vadd.s32 %v61, 24
    %vm65 = vcmp.lt.s32.totalorder %v61, 0
    %v66 = vsub.s32 0, %v61
    %v67 = vsel %vm65, %v66, %v61
    %v68 = vshrl.u32 %v67, 4
    %v69 = vand.u32 %v67, 15
    %v70 = vsub.s32 0, %v69
    %v71 = vsel %vm65, %v70, %v69
    %vm72 = vcmp.lt.s32.totalorder %v62, 0
    %v73 = vsub.s32 0, %v62
    %v74 = vsel %vm72, %v73, %v62
    %v75 = vshrl.u32 %v74, 4
    %v76 = vand.u32 %v74, 15
    %v77 = vsub.s32 0, %v76
    %v78 = vsel %vm72, %v77, %v76
    %vm79 = vcmp.lt.s32.totalorder %v63, 0
    %v80 = vsub.s32 0, %v63
    %v81 = vsel %vm79, %v80, %v63
    %v82 = vshrl.u32 %v81, 4
    %v83 = vand.u32 %v81, 15
    %v84 = vsub.s32 0, %v83
    %v85 = vsel %vm79, %v84, %v83
    %vm86 = vcmp.lt.s32.totalorder %v64, 0
    %v87 = vsub.s32 0, %v64
    %v88 = vsel %vm86, %v87, %v64
    %v89 = vshrl.u32 %v88, 4
    %v90 = vand.u32 %v88, 15
    %v91 = vsub.s32 0, %v90
    %v92 = vsel %vm86, %v91, %v90
    %vm93 = vcmp.ne.s32.totalorder %v71, 0
    %vm94 = vcmp.ne.s32.totalorder %v78, 0
    %vm95 = vcmp.ne.s32.totalorder %v85, 0
    %vm96 = vcmp.ne.s32.totalorder %v92, 0
    %vm97 = vcmp.lt.s32.totalorder %v71, 0
    %vm98 = vcmp.lt.s32.totalorder %v78, 0
    %vm99 = vcmp.lt.s32.totalorder %v85, 0
    %vm100 = vcmp.lt.s32.totalorder %v92, 0
    %vm101 = vmand %vm97, %vm93
    %vm102 = vmand %vm98, %vm94
    %vm103 = vmand %vm99, %vm95
    %vm104 = vmand %vm100, %vm96
    %v105 = vadd.s32 %v71, 16
    %v106 = vadd.s32 %v78, 16
    %v107 = vadd.s32 %v85, 16
    %v108 = vadd.s32 %v92, 16
    %v109 = vsel %vm101, %v105, %v71
    %v110 = vsel %vm102, %v106, %v78
    %v111 = vsel %vm103, %v107, %v85
    %v112 = vsel %vm104, %v108, %v92
    %vm113 = vcmp.gt.s32.totalorder %v109, 0
    %vm114 = vcmp.gt.s32.totalorder %v110, 0
    %vm115 = vcmp.gt.s32.totalorder %v111, 0
    %vm116 = vcmp.gt.s32.totalorder %v112, 0
    %vm117 = vcmp.lt.s32.totalorder %v109, 15
    %vm118 = vcmp.lt.s32.totalorder %v110, 15
    %vm119 = vcmp.lt.s32.totalorder %v111, 15
    %vm120 = vcmp.lt.s32.totalorder %v112, 15
    %v121 = vld [vmem:[%s3] sm:$0xf]
    %v122 = vld [vmem:[#allocation2] sm:$0xff]
    %v123 = vld [vmem:[#allocation2 + $0x8] sm:$0xff]
    %v124 = vld [vmem:[#allocation2 + $0x10] sm:$0xff]
    %v125 = vld [vmem:[#allocation2 + $0x18] sm:$0xff]
    %vm130 = vcmask 1040384
    %v131 = vrot.slane %v122, 7
    %v132 = vrot.slane %v123, 7
    %v133 = vsel %vm130, %v131, %v132
    %v134 = vrot.slane %v124, 7
    %v135 = vsel %vm130, %v132, %v134
    %v136 = vrot.slane %v125, 7
    %v137 = vsel %vm130, %v134, %v136
    %v142 = vsel %vm130, 0.0, %v131
    %v143 = vsel %vm113, 1, 0
    %v144 = vsel %vm114, 1, 0
    %v145 = vsel %vm115, 1, 0
    %v146 = vsel %vm116, 1, 0
    %vm147 = vcmp.eq.s32.totalorder %v143, 1
    %vm148 = vcmp.eq.s32.totalorder %v144, 1
    %vm149 = vcmp.eq.s32.totalorder %v145, 1
    %vm150 = vcmp.eq.s32.totalorder %v146, 1
    %v151 = vsel %vm147, %v142, 0.0
    %v152 = vsel %vm148, %v133, 0.0
    %v153 = vsel %vm149, %v135, 0.0
    %v154 = vsel %vm150, %v137, 0.0
    %vm155 = vcmask 1046528
    %v156 = vrot.slane %v122, 1
    %v157 = vrot.slane %v123, 1
    %v158 = vsel %vm155, %v156, %v157
    %v159 = vrot.slane %v124, 1
    %v160 = vsel %vm155, %v157, %v159
    %v161 = vrot.slane %v125, 1
    %v162 = vsel %vm155, %v159, %v161
    %v167 = vsel %vm155, %v161, 0.0
    %v168 = vsel %vm117, 1, 0
    %v169 = vsel %vm118, 1, 0
    %v170 = vsel %vm119, 1, 0
    %v171 = vsel %vm120, 1, 0
    %vm172 = vcmp.eq.s32.totalorder %v168, 1
    %vm173 = vcmp.eq.s32.totalorder %v169, 1
    %vm174 = vcmp.eq.s32.totalorder %v170, 1
    %vm175 = vcmp.eq.s32.totalorder %v171, 1
    %v176 = vsel %vm172, %v158, 0.0
    %v177 = vsel %vm173, %v160, 0.0
    %v178 = vsel %vm174, %v162, 0.0
    %v179 = vsel %vm175, %v167, 0.0
    %v180 = vpack.c.bf16 %v152, %v151
    %v181 = vpack.c.bf16 %v154, %v153
    %v182 = vld [vmem:[#allocation5] sm:$0xf]
    %v183 = vld [vmem:[#allocation5 + $0x4] sm:$0xf]
    %v184 = vld [vmem:[#allocation5 + $0x8] sm:$0xf]
    %v185 = vld [vmem:[#allocation5 + $0xc] sm:$0xf]
    %v186 = vld [vmem:[#allocation5 + $0x10] sm:$0xf]
    %v187 = vld [vmem:[#allocation5 + $0x14] sm:$0xf]
    %v188 = vld [vmem:[#allocation5 + $0x18] sm:$0xf]
    %v189 = vld [vmem:[#allocation5 + $0x1c] sm:$0xf]
    %v190 = vpack.c.bf16 %v123, %v122
    %v191 = vpack.c.bf16 %v125, %v124
    %s192 = scalar_lea.vmem [#allocation5], 32
    %v193 = vld [vmem:[%s192] sm:$0xf]
    %v194 = vld [vmem:[%s192 + $0x4] sm:$0xf]
    %v195 = vld [vmem:[%s192 + $0x8] sm:$0xf]
    %v196 = vld [vmem:[%s192 + $0xc] sm:$0xf]
    %v197 = vld [vmem:[%s192 + $0x10] sm:$0xf]
    %v198 = vld [vmem:[%s192 + $0x14] sm:$0xf]
    %v199 = vld [vmem:[%s192 + $0x18] sm:$0xf]
    %v200 = vld [vmem:[%s192 + $0x1c] sm:$0xf]
    %v209 = vunpack.c.l.b16 %v193
    %v210 = vunpack.c.l.b16 %v194
    %v211 = vunpack.c.l.b16 %v195
    %v212 = vunpack.c.l.b16 %v196
    %v213 = vunpack.c.l.b16 %v197
    %v214 = vunpack.c.l.b16 %v198
    %v215 = vunpack.c.l.b16 %v199
    %v216 = vunpack.c.l.b16 %v200
    %v217 = vpack.c.b16 %v210, %v209
    %v218 = vpack.c.b16 %v212, %v211
    %v219 = vpack.c.b16 %v214, %v213
    %v220 = vpack.c.b16 %v216, %v215
    %vm225 = vcmask 523264
    %v227 = vsel %vm225, %v190, 0
    %v230 = vsel %vm225, %v191, 0
    %232 = vmatprep.subr.bf16.mxu0 0
    %233 = vmatpush1.bf16.msra.mxu0 %v217
    %234 = vmatprep.subr.bf16.mxu0 0
    %235 = vmatpush1.bf16.msra.mxu0 %v218
    %236 = vmatprep.subr.bf16.mxu0 0
    %237 = vmatpush1.bf16.msra.mxu0 %v219
    %238 = vmatprep.subr.bf16.mxu0 0
    %239 = vmatpush1.bf16.msra.mxu0 %v220
    %240 = vmatprep.subr.bf16.mxu0 0
    %241 = vmatpush1.bf16.msra.mxu0 0
    %242 = vmatprep.subr.bf16.mxu0 0
    %243 = vmatpush1.bf16.msra.mxu0 0
    %244 = vmatprep.subr.bf16.mxu0 0
    %245 = vmatpush1.bf16.msra.mxu0 0
    %246 = vmatprep.subr.bf16.mxu0 0
    %247 = vmatpush1.bf16.msra.mxu0 0
    %248 = vmatprep.subr.bf16.mxu0 0
    %249 = vmatpush1.bf16.msra.mxu0 0
    %250 = vmatprep.subr.bf16.mxu0 0
    %251 = vmatpush1.bf16.msra.mxu0 0
    %252 = vmatprep.subr.bf16.mxu0 0
    %253 = vmatpush1.bf16.msra.mxu0 0
    %254 = vmatprep.subr.bf16.mxu0 0
    %255 = vmatpush1.bf16.msra.mxu0 0
    %256 = vmatprep.subr.bf16.mxu0 0
    %257 = vmatpush1.bf16.msra.mxu0 0
    %258 = vmatprep.subr.bf16.mxu0 0
    %259 = vmatpush1.bf16.msra.mxu0 0
    %260 = vmatprep.subr.bf16.mxu0 0
    %261 = vmatpush1.bf16.msra.mxu0 0
    %262 = vmatprep.subr.bf16.mxu0 0
    %263 = vmatpush1.bf16.msra.mxu0 0
    %264 = vmatprep.mubr.bf16.mxu0 0
    %265 = vmatmul.mubr.bf16.gmra.mrb[0].mxu0 %v227
    %v266 = vpop.f32.mrb[0].mxu0
    %v267 = vadd.f32 0.0, %v266
    %v268 = vpop.f32.mrb[0].mxu0
    %v269 = vpop.f32.mrb[0].mxu0
    %v270 = vadd.f32 0.0, %v269
    %v271 = vpop.f32.mrb[0].mxu0
    %272 = vmatprep.mubr.bf16.mxu0 0
    %273 = vmatmul.mubr.bf16.gmra.mrb[0].mxu0 %v230
    %v274 = vpop.f32.mrb[0].mxu0
    %v275 = vadd.f32 0.0, %v274
    %v276 = vpop.f32.mrb[0].mxu0
    %v277 = vpop.f32.mrb[0].mxu0
    %v278 = vadd.f32 0.0, %v277
    %v279 = vpop.f32.mrb[0].mxu0
    %280 = vdwg.mxu0
    %v289 = vunpack.c.l.b16 %v182
    %v290 = vunpack.c.l.b16 %v183
    %v291 = vunpack.c.l.b16 %v184
    %v292 = vunpack.c.l.b16 %v185
    %v293 = vunpack.c.l.b16 %v186
    %v294 = vunpack.c.l.b16 %v187
    %v295 = vunpack.c.l.b16 %v188
    %v296 = vunpack.c.l.b16 %v189
    %v297 = vpack.c.b16 %v290, %v289
    %v298 = vpack.c.b16 %v292, %v291
    %v299 = vpack.c.b16 %v294, %v293
    %v300 = vpack.c.b16 %v296, %v295
    %v306 = vsel %vm225, %v180, 0
    %v309 = vsel %vm225, %v181, 0
    %311 = vmatprep.subr.bf16.mxu0 0
    %312 = vmatpush1.bf16.msra.mxu0 %v297
    %313 = vmatprep.subr.bf16.mxu0 0
    %314 = vmatpush1.bf16.msra.mxu0 %v298
    %315 = vmatprep.subr.bf16.mxu0 0
    %316 = vmatpush1.bf16.msra.mxu0 %v299
    %317 = vmatprep.subr.bf16.mxu0 0
    %318 = vmatpush1.bf16.msra.mxu0 %v300
    %319 = vmatprep.subr.bf16.mxu0 0
    %320 = vmatpush1.bf16.msra.mxu0 0
    %321 = vmatprep.subr.bf16.mxu0 0
    %322 = vmatpush1.bf16.msra.mxu0 0
    %323 = vmatprep.subr.bf16.mxu0 0
    %324 = vmatpush1.bf16.msra.mxu0 0
    %325 = vmatprep.subr.bf16.mxu0 0
    %326 = vmatpush1.bf16.msra.mxu0 0
    %327 = vmatprep.subr.bf16.mxu0 0
    %328 = vmatpush1.bf16.msra.mxu0 0
    %329 = vmatprep.subr.bf16.mxu0 0
    %330 = vmatpush1.bf16.msra.mxu0 0
    %331 = vmatprep.subr.bf16.mxu0 0
    %332 = vmatpush1.bf16.msra.mxu0 0
    %333 = vmatprep.subr.bf16.mxu0 0
    %334 = vmatpush1.bf16.msra.mxu0 0
    %335 = vmatprep.subr.bf16.mxu0 0
    %336 = vmatpush1.bf16.msra.mxu0 0
    %337 = vmatprep.subr.bf16.mxu0 0
    %338 = vmatpush1.bf16.msra.mxu0 0
    %339 = vmatprep.subr.bf16.mxu0 0
    %340 = vmatpush1.bf16.msra.mxu0 0
    %341 = vmatprep.subr.bf16.mxu0 0
    %342 = vmatpush1.bf16.msra.mxu0 0
    %343 = vmatprep.mubr.bf16.mxu0 0
    %344 = vmatmul.mubr.bf16.gmra.mrb[0].mxu0 %v306
    %v345 = vpop.f32.mrb[0].mxu0
    %v346 = vadd.f32 %v267, %v345
    %v347 = vpop.f32.mrb[0].mxu0
    %v348 = vpop.f32.mrb[0].mxu0
    %v349 = vadd.f32 %v270, %v348
    %v350 = vpop.f32.mrb[0].mxu0
    %351 = vmatprep.mubr.bf16.mxu0 0
    %352 = vmatmul.mubr.bf16.gmra.mrb[0].mxu0 %v309
    %v353 = vpop.f32.mrb[0].mxu0
    %v354 = vadd.f32 %v275, %v353
    %v355 = vpop.f32.mrb[0].mxu0
    %v356 = vpop.f32.mrb[0].mxu0
    %v357 = vadd.f32 %v278, %v356
    %v358 = vpop.f32.mrb[0].mxu0
    %359 = vdwg.mxu0
    %v360 = vpack.c.bf16 %v177, %v176
    %v361 = vpack.c.bf16 %v179, %v178
    %s362 = scalar_lea.vmem [#allocation5], 64
    %v363 = vld [vmem:[%s362] sm:$0xf]
    %v364 = vld [vmem:[%s362 + $0x4] sm:$0xf]
    %v365 = vld [vmem:[%s362 + $0x8] sm:$0xf]
    %v366 = vld [vmem:[%s362 + $0xc] sm:$0xf]
    %v367 = vld [vmem:[%s362 + $0x10] sm:$0xf]
    %v368 = vld [vmem:[%s362 + $0x14] sm:$0xf]
    %v369 = vld [vmem:[%s362 + $0x18] sm:$0xf]
    %v370 = vld [vmem:[%s362 + $0x1c] sm:$0xf]
    %v379 = vunpack.c.l.b16 %v363
    %v380 = vunpack.c.l.b16 %v364
    %v381 = vunpack.c.l.b16 %v365
    %v382 = vunpack.c.l.b16 %v366
    %v383 = vunpack.c.l.b16 %v367
    %v384 = vunpack.c.l.b16 %v368
    %v385 = vunpack.c.l.b16 %v369
    %v386 = vunpack.c.l.b16 %v370
    %v387 = vpack.c.b16 %v380, %v379
    %v388 = vpack.c.b16 %v382, %v381
    %v389 = vpack.c.b16 %v384, %v383
    %v390 = vpack.c.b16 %v386, %v385
    %v396 = vsel %vm225, %v360, 0
    %v399 = vsel %vm225, %v361, 0
    %401 = vmatprep.subr.bf16.mxu0 0
    %402 = vmatpush1.bf16.msra.mxu0 %v387
    %403 = vmatprep.subr.bf16.mxu0 0
    %404 = vmatpush1.bf16.msra.mxu0 %v388
    %405 = vmatprep.subr.bf16.mxu0 0
    %406 = vmatpush1.bf16.msra.mxu0 %v389
    %407 = vmatprep.subr.bf16.mxu0 0
    %408 = vmatpush1.bf16.msra.mxu0 %v390
    %409 = vmatprep.subr.bf16.mxu0 0
    %410 = vmatpush1.bf16.msra.mxu0 0
    %411 = vmatprep.subr.bf16.mxu0 0
    %412 = vmatpush1.bf16.msra.mxu0 0
    %413 = vmatprep.subr.bf16.mxu0 0
    %414 = vmatpush1.bf16.msra.mxu0 0
    %415 = vmatprep.subr.bf16.mxu0 0
    %416 = vmatpush1.bf16.msra.mxu0 0
    %417 = vmatprep.subr.bf16.mxu0 0
    %418 = vmatpush1.bf16.msra.mxu0 0
    %419 = vmatprep.subr.bf16.mxu0 0
    %420 = vmatpush1.bf16.msra.mxu0 0
    %421 = vmatprep.subr.bf16.mxu0 0
    %422 = vmatpush1.bf16.msra.mxu0 0
    %423 = vmatprep.subr.bf16.mxu0 0
    %424 = vmatpush1.bf16.msra.mxu0 0
    %425 = vmatprep.subr.bf16.mxu0 0
    %426 = vmatpush1.bf16.msra.mxu0 0
    %427 = vmatprep.subr.bf16.mxu0 0
    %428 = vmatpush1.bf16.msra.mxu0 0
    %429 = vmatprep.subr.bf16.mxu0 0
    %430 = vmatpush1.bf16.msra.mxu0 0
    %431 = vmatprep.subr.bf16.mxu0 0
    %432 = vmatpush1.bf16.msra.mxu0 0
    %433 = vmatprep.mubr.bf16.mxu0 0
    %434 = vmatmul.mubr.bf16.gmra.mrb[0].mxu0 %v396
    %v435 = vpop.f32.mrb[0].mxu0
    %v436 = vadd.f32 0.0, %v435
    %v437 = vpop.f32.mrb[0].mxu0
    %v438 = vpop.f32.mrb[0].mxu0
    %v439 = vadd.f32 0.0, %v438
    %v440 = vpop.f32.mrb[0].mxu0
    %441 = vmatprep.mubr.bf16.mxu0 0
    %442 = vmatmul.mubr.bf16.gmra.mrb[0].mxu0 %v399
    %v443 = vpop.f32.mrb[0].mxu0
    %v444 = vadd.f32 0.0, %v443
    %v445 = vpop.f32.mrb[0].mxu0
    %v446 = vpop.f32.mrb[0].mxu0
    %v447 = vadd.f32 0.0, %v446
    %v448 = vpop.f32.mrb[0].mxu0
    %449 = vdwg.mxu0
    %v450 = vadd.f32 %v346, %v436
    %v451 = vadd.f32 %v349, %v439
    %v452 = vadd.f32 %v354, %v444
    %v453 = vadd.f32 %v357, %v447
    %v454 = vadd.f32 %v450, %v451
    %v455 = vadd.f32 %v454, %v452
    %v456 = vadd.f32 %v455, %v453
    %v457 = vrot.slane %v456, 4
    %v458 = vadd.f32 %v456, %v457
    %v459 = vrot.slane %v458, 2
    %v460 = vadd.f32 %v458, %v459
    %v461 = vrot.slane %v460, 1
    %v462 = vadd.f32 %v460, %v461
    %v463 = vmul.f32 %v450, %v450
    %v464 = vmul.f32 %v451, %v451
    %v465 = vmul.f32 %v452, %v452
    %v466 = vmul.f32 %v453, %v453
    %v467 = vadd.f32 %v463, %v464
    %v468 = vadd.f32 %v467, %v465
    %v469 = vadd.f32 %v468, %v466
    %v470 = vrot.slane %v469, 4
    %v471 = vadd.f32 %v469, %v470
    %v472 = vrot.slane %v471, 2
    %v473 = vadd.f32 %v471, %v472
    %v474 = vrot.slane %v473, 1
    %v475 = vadd.f32 %v473, %v474
    %v476 = vsel %vm130, %v462, %v475
    %477 = vrot.lane.b32.xlu0 %v476, 8
    %v478 = vpop.permute.xlu0 %477
    %v479 = vadd.f32 %v476, %v478
    %480 = vrot.lane.b32.xlu0 %v479, 16
    %v481 = vpop.permute.xlu0 %480
    %v482 = vadd.f32 %v479, %v481
    %483 = vrot.lane.b32.xlu0 %v482, 32
    %v484 = vpop.permute.xlu0 %483
    %v485 = vadd.f32 %v482, %v484
    %486 = vrot.lane.b32.xlu0 %v485, 64
    %v487 = vpop.permute.xlu0 %486
    %v488 = vadd.f32 %v485, %v487
    %v489 = vmul.f32 %v488, 0.001953125
    %v490 = vmul.f32 %v489, %v489
    %v492 = vrot.slane %v490, 7
    %v494 = vsub.f32 %v489, %v492
    %v495 = vadd.f32 %v494, 1e-05
    %v496 = vrsqrt.pop %v495
    %v498 = vrot.slane %v496, 1
    %v500 = vmul.f32 %v121, %v498
    %v501 = vmul.f32 %v489, %v500
    %v503 = vrot.slane %v501, 7
    %v505 = vsub.f32 %v121, %v503
    %v506 = vlaneseq
    %v507 = vshrl.u32 %v506, 7
    %v508 = vsub.s32 0, %v507
    %v509 = vrot.slane %v500, %v508
    %v510 = vmul.f32 %v450, %v509
    %v511 = vmul.f32 %v451, %v509
    %v512 = vmul.f32 %v452, %v509
    %v513 = vmul.f32 %v453, %v509
    %v514 = vlaneseq
    %v515 = vshrl.u32 %v514, 7
    %v516 = vsub.s32 1, %v515
    %v517 = vrot.slane %v505, %v516
    %v518 = vadd.f32 %v510, %v517
    %v519 = vadd.f32 %v511, %v517
    %v520 = vadd.f32 %v512, %v517
    %v521 = vadd.f32 %v513, %v517
    %v522 = vmax.f32 %v518, 0.0
    %v523 = vmax.f32 %v519, 0.0
    %v524 = vmax.f32 %v520, 0.0
    %v525 = vmax.f32 %v521, 0.0
    %v530 = vrot.slane %v522, 7
    %v531 = vrot.slane %v523, 7
    %v532 = vsel %vm130, %v530, %v531
    %v533 = vrot.slane %v524, 7
    %v534 = vsel %vm130, %v531, %v533
    %v535 = vrot.slane %v525, 7
    %v536 = vsel %vm130, %v533, %v535
    %v541 = vsel %vm130, 0.0, %v530
    %v542 = vsel %vm147, %v541, 0.0
    %v543 = vsel %vm148, %v532, 0.0
    %v544 = vsel %vm149, %v534, 0.0
    %v545 = vsel %vm150, %v536, 0.0
    %v546 = vrot.slane %v522, 1
    %v547 = vrot.slane %v523, 1
    %v548 = vsel %vm155, %v546, %v547
    %v549 = vrot.slane %v524, 1
    %v550 = vsel %vm155, %v547, %v549
    %v551 = vrot.slane %v525, 1
    %v552 = vsel %vm155, %v549, %v551
    %v557 = vsel %vm155, %v551, 0.0
    %v558 = vsel %vm172, %v548, 0.0
    %v559 = vsel %vm173, %v550, 0.0
    %v560 = vsel %vm174, %v552, 0.0
    %v561 = vsel %vm175, %v557, 0.0
    %v562 = vpack.c.bf16 %v543, %v542
    %v563 = vpack.c.bf16 %v545, %v544
    %v564 = vld [vmem:[#allocation7] sm:$0xf]
    %v565 = vld [vmem:[#allocation7 + $0x4] sm:$0xf]
    %v566 = vld [vmem:[#allocation7 + $0x8] sm:$0xf]
    %v567 = vld [vmem:[#allocation7 + $0xc] sm:$0xf]
    %v568 = vld [vmem:[#allocation7 + $0x10] sm:$0xf]
    %v569 = vld [vmem:[#allocation7 + $0x14] sm:$0xf]
    %v570 = vld [vmem:[#allocation7 + $0x18] sm:$0xf]
    %v571 = vld [vmem:[#allocation7 + $0x1c] sm:$0xf]
    %v572 = vld [vmem:[#allocation7 + $0x20] sm:$0xf]
    %v573 = vld [vmem:[#allocation7 + $0x24] sm:$0xf]
    %v574 = vld [vmem:[#allocation7 + $0x28] sm:$0xf]
    %v575 = vld [vmem:[#allocation7 + $0x2c] sm:$0xf]
    %v576 = vld [vmem:[#allocation7 + $0x30] sm:$0xf]
    %v577 = vld [vmem:[#allocation7 + $0x34] sm:$0xf]
    %v578 = vld [vmem:[#allocation7 + $0x38] sm:$0xf]
    %v579 = vld [vmem:[#allocation7 + $0x3c] sm:$0xf]
    %v580 = vpack.c.bf16 %v523, %v522
    %v581 = vpack.c.bf16 %v525, %v524
    %s582 = scalar_lea.vmem [#allocation7], 64
    %v583 = vld [vmem:[%s582] sm:$0xf]
    %v584 = vld [vmem:[%s582 + $0x4] sm:$0xf]
    %v585 = vld [vmem:[%s582 + $0x8] sm:$0xf]
    %v586 = vld [vmem:[%s582 + $0xc] sm:$0xf]
    %v587 = vld [vmem:[%s582 + $0x10] sm:$0xf]
    %v588 = vld [vmem:[%s582 + $0x14] sm:$0xf]
    %v589 = vld [vmem:[%s582 + $0x18] sm:$0xf]
    %v590 = vld [vmem:[%s582 + $0x1c] sm:$0xf]
    %v591 = vld [vmem:[%s582 + $0x20] sm:$0xf]
    %v592 = vld [vmem:[%s582 + $0x24] sm:$0xf]
    %v593 = vld [vmem:[%s582 + $0x28] sm:$0xf]
    %v594 = vld [vmem:[%s582 + $0x2c] sm:$0xf]
    %v595 = vld [vmem:[%s582 + $0x30] sm:$0xf]
    %v596 = vld [vmem:[%s582 + $0x34] sm:$0xf]
    %v597 = vld [vmem:[%s582 + $0x38] sm:$0xf]
    %v598 = vld [vmem:[%s582 + $0x3c] sm:$0xf]
    %v615 = vunpack.c.l.b16 %v583
    %v616 = vunpack.c.l.b16 %v584
    %v617 = vunpack.c.l.b16 %v585
    %v618 = vunpack.c.l.b16 %v586
    %v619 = vunpack.c.l.b16 %v587
    %v620 = vunpack.c.l.b16 %v588
    %v621 = vunpack.c.l.b16 %v589
    %v622 = vunpack.c.l.b16 %v590
    %v623 = vunpack.c.l.b16 %v591
    %v624 = vunpack.c.l.b16 %v592
    %v625 = vunpack.c.l.b16 %v593
    %v626 = vunpack.c.l.b16 %v594
    %v627 = vunpack.c.l.b16 %v595
    %v628 = vunpack.c.l.b16 %v596
    %v629 = vunpack.c.l.b16 %v597
    %v630 = vunpack.c.l.b16 %v598
    %v631 = vpack.c.b16 %v616, %v615
    %v632 = vpack.c.b16 %v618, %v617
    %v633 = vpack.c.b16 %v620, %v619
    %v634 = vpack.c.b16 %v622, %v621
    %v635 = vpack.c.b16 %v624, %v623
    %v636 = vpack.c.b16 %v626, %v625
    %v637 = vpack.c.b16 %v628, %v627
    %v638 = vpack.c.b16 %v630, %v629
    %647 = vmatprep.subr.bf16.mxu0 0
    %648 = vmatpush1.bf16.msra.mxu0 %v631
    %649 = vmatprep.subr.bf16.mxu0 0
    %650 = vmatpush1.bf16.msra.mxu0 %v632
    %651 = vmatprep.subr.bf16.mxu0 0
    %652 = vmatpush1.bf16.msra.mxu0 %v633
    %653 = vmatprep.subr.bf16.mxu0 0
    %654 = vmatpush1.bf16.msra.mxu0 %v634
    %655 = vmatprep.subr.bf16.mxu0 0
    %656 = vmatpush1.bf16.msra.mxu0 %v635
    %657 = vmatprep.subr.bf16.mxu0 0
    %658 = vmatpush1.bf16.msra.mxu0 %v636
    %659 = vmatprep.subr.bf16.mxu0 0
    %660 = vmatpush1.bf16.msra.mxu0 %v637
    %661 = vmatprep.subr.bf16.mxu0 0
    %662 = vmatpush1.bf16.msra.mxu0 %v638
    %663 = vmatprep.subr.bf16.mxu0 0
    %664 = vmatpush1.bf16.msra.mxu0 0
    %665 = vmatprep.subr.bf16.mxu0 0
    %666 = vmatpush1.bf16.msra.mxu0 0
    %667 = vmatprep.subr.bf16.mxu0 0
    %668 = vmatpush1.bf16.msra.mxu0 0
    %669 = vmatprep.subr.bf16.mxu0 0
    %670 = vmatpush1.bf16.msra.mxu0 0
    %671 = vmatprep.subr.bf16.mxu0 0
    %672 = vmatpush1.bf16.msra.mxu0 0
    %673 = vmatprep.subr.bf16.mxu0 0
    %674 = vmatpush1.bf16.msra.mxu0 0
    %675 = vmatprep.subr.bf16.mxu0 0
    %676 = vmatpush1.bf16.msra.mxu0 0
    %677 = vmatprep.subr.bf16.mxu0 0
    %678 = vmatpush1.bf16.msra.mxu0 0
    %679 = vmatprep.mubr.bf16.mxu0 0
    %680 = vmatmul.mubr.bf16.gmra.mrb[0].mxu0 %v580
    %v681 = vpop.f32.mrb[0].mxu0
    %v682 = vadd.f32 0.0, %v681
    %v683 = vpop.f32.mrb[0].mxu0
    %v684 = vpop.f32.mrb[0].mxu0
    %v685 = vadd.f32 0.0, %v684
    %v686 = vpop.f32.mrb[0].mxu0
    %687 = vmatprep.mubr.bf16.mxu0 0
    %688 = vmatmul.mubr.bf16.gmra.mrb[0].mxu0 %v581
    %v689 = vpop.f32.mrb[0].mxu0
    %v690 = vadd.f32 0.0, %v689
    %v691 = vpop.f32.mrb[0].mxu0
    %v692 = vpop.f32.mrb[0].mxu0
    %v693 = vadd.f32 0.0, %v692
    %v694 = vpop.f32.mrb[0].mxu0
    %695 = vdwg.mxu0
    %v712 = vunpack.c.l.b16 %v564
    %v713 = vunpack.c.l.b16 %v565
    %v714 = vunpack.c.l.b16 %v566
    %v715 = vunpack.c.l.b16 %v567
    %v716 = vunpack.c.l.b16 %v568
    %v717 = vunpack.c.l.b16 %v569
    %v718 = vunpack.c.l.b16 %v570
    %v719 = vunpack.c.l.b16 %v571
    %v720 = vunpack.c.l.b16 %v572
    %v721 = vunpack.c.l.b16 %v573
    %v722 = vunpack.c.l.b16 %v574
    %v723 = vunpack.c.l.b16 %v575
    %v724 = vunpack.c.l.b16 %v576
    %v725 = vunpack.c.l.b16 %v577
    %v726 = vunpack.c.l.b16 %v578
    %v727 = vunpack.c.l.b16 %v579
    %v728 = vpack.c.b16 %v713, %v712
    %v729 = vpack.c.b16 %v715, %v714
    %v730 = vpack.c.b16 %v717, %v716
    %v731 = vpack.c.b16 %v719, %v718
    %v732 = vpack.c.b16 %v721, %v720
    %v733 = vpack.c.b16 %v723, %v722
    %v734 = vpack.c.b16 %v725, %v724
    %v735 = vpack.c.b16 %v727, %v726
    %744 = vmatprep.subr.bf16.mxu0 0
    %745 = vmatpush1.bf16.msra.mxu0 %v728
    %746 = vmatprep.subr.bf16.mxu0 0
    %747 = vmatpush1.bf16.msra.mxu0 %v729
    %748 = vmatprep.subr.bf16.mxu0 0
    %749 = vmatpush1.bf16.msra.mxu0 %v730
    %750 = vmatprep.subr.bf16.mxu0 0
    %751 = vmatpush1.bf16.msra.mxu0 %v731
    %752 = vmatprep.subr.bf16.mxu0 0
    %753 = vmatpush1.bf16.msra.mxu0 %v732
    %754 = vmatprep.subr.bf16.mxu0 0
    %755 = vmatpush1.bf16.msra.mxu0 %v733
    %756 = vmatprep.subr.bf16.mxu0 0
    %757 = vmatpush1.bf16.msra.mxu0 %v734
    %758 = vmatprep.subr.bf16.mxu0 0
    %759 = vmatpush1.bf16.msra.mxu0 %v735
    %760 = vmatprep.subr.bf16.mxu0 0
    %761 = vmatpush1.bf16.msra.mxu0 0
    %762 = vmatprep.subr.bf16.mxu0 0
    %763 = vmatpush1.bf16.msra.mxu0 0
    %764 = vmatprep.subr.bf16.mxu0 0
    %765 = vmatpush1.bf16.msra.mxu0 0
    %766 = vmatprep.subr.bf16.mxu0 0
    %767 = vmatpush1.bf16.msra.mxu0 0
    %768 = vmatprep.subr.bf16.mxu0 0
    %769 = vmatpush1.bf16.msra.mxu0 0
    %770 = vmatprep.subr.bf16.mxu0 0
    %771 = vmatpush1.bf16.msra.mxu0 0
    %772 = vmatprep.subr.bf16.mxu0 0
    %773 = vmatpush1.bf16.msra.mxu0 0
    %774 = vmatprep.subr.bf16.mxu0 0
    %775 = vmatpush1.bf16.msra.mxu0 0
    %776 = vmatprep.mubr.bf16.mxu0 0
    %777 = vmatmul.mubr.bf16.gmra.mrb[0].mxu0 %v562
    %v778 = vpop.f32.mrb[0].mxu0
    %v779 = vadd.f32 %v682, %v778
    %v780 = vpop.f32.mrb[0].mxu0
    %v781 = vpop.f32.mrb[0].mxu0
    %v782 = vadd.f32 %v685, %v781
    %v783 = vpop.f32.mrb[0].mxu0
    %784 = vmatprep.mubr.bf16.mxu0 0
    %785 = vmatmul.mubr.bf16.gmra.mrb[0].mxu0 %v563
    %v786 = vpop.f32.mrb[0].mxu0
    %v787 = vadd.f32 %v690, %v786
    %v788 = vpop.f32.mrb[0].mxu0
    %v789 = vpop.f32.mrb[0].mxu0
    %v790 = vadd.f32 %v693, %v789
    %v791 = vpop.f32.mrb[0].mxu0
    %792 = vdwg.mxu0
    %v793 = vpack.c.bf16 %v559, %v558
    %v794 = vpack.c.bf16 %v561, %v560
    %s795 = scalar_lea.vmem [#allocation7], 128
    %v796 = vld [vmem:[%s795] sm:$0xf]
    %v797 = vld [vmem:[%s795 + $0x4] sm:$0xf]
    %v798 = vld [vmem:[%s795 + $0x8] sm:$0xf]
    %v799 = vld [vmem:[%s795 + $0xc] sm:$0xf]
    %v800 = vld [vmem:[%s795 + $0x10] sm:$0xf]
    %v801 = vld [vmem:[%s795 + $0x14] sm:$0xf]
    %v802 = vld [vmem:[%s795 + $0x18] sm:$0xf]
    %v803 = vld [vmem:[%s795 + $0x1c] sm:$0xf]
    %v804 = vld [vmem:[%s795 + $0x20] sm:$0xf]
    %v805 = vld [vmem:[%s795 + $0x24] sm:$0xf]
    %v806 = vld [vmem:[%s795 + $0x28] sm:$0xf]
    %v807 = vld [vmem:[%s795 + $0x2c] sm:$0xf]
    %v808 = vld [vmem:[%s795 + $0x30] sm:$0xf]
    %v809 = vld [vmem:[%s795 + $0x34] sm:$0xf]
    %v810 = vld [vmem:[%s795 + $0x38] sm:$0xf]
    %v811 = vld [vmem:[%s795 + $0x3c] sm:$0xf]
    %v828 = vunpack.c.l.b16 %v796
    %v829 = vunpack.c.l.b16 %v797
    %v830 = vunpack.c.l.b16 %v798
    %v831 = vunpack.c.l.b16 %v799
    %v832 = vunpack.c.l.b16 %v800
    %v833 = vunpack.c.l.b16 %v801
    %v834 = vunpack.c.l.b16 %v802
    %v835 = vunpack.c.l.b16 %v803
    %v836 = vunpack.c.l.b16 %v804
    %v837 = vunpack.c.l.b16 %v805
    %v838 = vunpack.c.l.b16 %v806
    %v839 = vunpack.c.l.b16 %v807
    %v840 = vunpack.c.l.b16 %v808
    %v841 = vunpack.c.l.b16 %v809
    %v842 = vunpack.c.l.b16 %v810
    %v843 = vunpack.c.l.b16 %v811
    %v844 = vpack.c.b16 %v829, %v828
    %v845 = vpack.c.b16 %v831, %v830
    %v846 = vpack.c.b16 %v833, %v832
    %v847 = vpack.c.b16 %v835, %v834
    %v848 = vpack.c.b16 %v837, %v836
    %v849 = vpack.c.b16 %v839, %v838
    %v850 = vpack.c.b16 %v841, %v840
    %v851 = vpack.c.b16 %v843, %v842
    %860 = vmatprep.subr.bf16.mxu0 0
    %861 = vmatpush1.bf16.msra.mxu0 %v844
    %862 = vmatprep.subr.bf16.mxu0 0
    %863 = vmatpush1.bf16.msra.mxu0 %v845
    %864 = vmatprep.subr.bf16.mxu0 0
    %865 = vmatpush1.bf16.msra.mxu0 %v846
    %866 = vmatprep.subr.bf16.mxu0 0
    %867 = vmatpush1.bf16.msra.mxu0 %v847
    %868 = vmatprep.subr.bf16.mxu0 0
    %869 = vmatpush1.bf16.msra.mxu0 %v848
    %870 = vmatprep.subr.bf16.mxu0 0
    %871 = vmatpush1.bf16.msra.mxu0 %v849
    %872 = vmatprep.subr.bf16.mxu0 0
    %873 = vmatpush1.bf16.msra.mxu0 %v850
    %874 = vmatprep.subr.bf16.mxu0 0
    %875 = vmatpush1.bf16.msra.mxu0 %v851
    %876 = vmatprep.subr.bf16.mxu0 0
    %877 = vmatpush1.bf16.msra.mxu0 0
    %878 = vmatprep.subr.bf16.mxu0 0
    %879 = vmatpush1.bf16.msra.mxu0 0
    %880 = vmatprep.subr.bf16.mxu0 0
    %881 = vmatpush1.bf16.msra.mxu0 0
    %882 = vmatprep.subr.bf16.mxu0 0
    %883 = vmatpush1.bf16.msra.mxu0 0
    %884 = vmatprep.subr.bf16.mxu0 0
    %885 = vmatpush1.bf16.msra.mxu0 0
    %886 = vmatprep.subr.bf16.mxu0 0
    %887 = vmatpush1.bf16.msra.mxu0 0
    %888 = vmatprep.subr.bf16.mxu0 0
    %889 = vmatpush1.bf16.msra.mxu0 0
    %890 = vmatprep.subr.bf16.mxu0 0
    %891 = vmatpush1.bf16.msra.mxu0 0
    %892 = vmatprep.mubr.bf16.mxu0 0
    %893 = vmatmul.mubr.bf16.gmra.mrb[0].mxu0 %v793
    %v894 = vpop.f32.mrb[0].mxu0
    %v895 = vadd.f32 0.0, %v894
    %v896 = vpop.f32.mrb[0].mxu0
    %v897 = vpop.f32.mrb[0].mxu0
    %v898 = vadd.f32 0.0, %v897
    %v899 = vpop.f32.mrb[0].mxu0
    %900 = vmatprep.mubr.bf16.mxu0 0
    %901 = vmatmul.mubr.bf16.gmra.mrb[0].mxu0 %v794
    %v902 = vpop.f32.mrb[0].mxu0
    %v903 = vadd.f32 0.0, %v902
    %v904 = vpop.f32.mrb[0].mxu0
    %v905 = vpop.f32.mrb[0].mxu0
    %v906 = vadd.f32 0.0, %v905
    %v907 = vpop.f32.mrb[0].mxu0
    %908 = vdwg.mxu0
    %v909 = vadd.f32 %v779, %v895
    %v910 = vadd.f32 %v782, %v898
    %v911 = vadd.f32 %v787, %v903
    %v912 = vadd.f32 %v790, %v906
    %v913 = vadd.f32 %v909, %v910
    %v914 = vadd.f32 %v913, %v911
    %v915 = vadd.f32 %v914, %v912
    %v916 = vrot.slane %v915, 4
    %v917 = vadd.f32 %v915, %v916
    %v918 = vrot.slane %v917, 2
    %v919 = vadd.f32 %v917, %v918
    %v920 = vrot.slane %v919, 1
    %v921 = vadd.f32 %v919, %v920
    %v922 = vmul.f32 %v909, %v909
    %v923 = vmul.f32 %v910, %v910
    %v924 = vmul.f32 %v911, %v911
    %v925 = vmul.f32 %v912, %v912
    %v926 = vadd.f32 %v922, %v923
    %v927 = vadd.f32 %v926, %v924
    %v928 = vadd.f32 %v927, %v925
    %v929 = vrot.slane %v928, 4
    %v930 = vadd.f32 %v928, %v929
    %v931 = vrot.slane %v930, 2
    %v932 = vadd.f32 %v930, %v931
    %v933 = vrot.slane %v932, 1
    %v934 = vadd.f32 %v932, %v933
    %v935 = vsel %vm130, %v921, %v934
    %936 = vrot.lane.b32.xlu0 %v935, 8
    %v937 = vpop.permute.xlu0 %936
    %v938 = vadd.f32 %v935, %v937
    %939 = vrot.lane.b32.xlu0 %v938, 16
    %v940 = vpop.permute.xlu0 %939
    %v941 = vadd.f32 %v938, %v940
    %942 = vrot.lane.b32.xlu0 %v941, 32
    %v943 = vpop.permute.xlu0 %942
    %v944 = vadd.f32 %v941, %v943
    %945 = vrot.lane.b32.xlu0 %v944, 64
    %v946 = vpop.permute.xlu0 %945
    %v947 = vadd.f32 %v944, %v946
    %v948 = vmul.f32 %v947, 0.001953125
    %v949 = vmul.f32 %v948, %v948
    %v951 = vrot.slane %v949, 7
    %v953 = vsub.f32 %v948, %v951
    %v954 = vadd.f32 %v953, 1e-05
    %v955 = vrsqrt.pop %v954
    %v957 = vrot.slane %v955, 7
    %v959 = vmul.f32 %v121, %v957
    %v961 = vrot.slane %v959, 2
    %v963 = vmul.f32 %v948, %v961
    %v965 = vrot.slane %v963, 5
    %v967 = vsub.f32 %v121, %v965
    %v968 = vlaneseq
    %v969 = vshrl.u32 %v968, 7
    %v970 = vsub.s32 2, %v969
    %v971 = vrot.slane %v959, %v970
    %v972 = vmul.f32 %v909, %v971
    %v973 = vmul.f32 %v910, %v971
    %v974 = vmul.f32 %v911, %v971
    %v975 = vmul.f32 %v912, %v971
    %v976 = vlaneseq
    %v977 = vshrl.u32 %v976, 7
    %v978 = vsub.s32 3, %v977
    %v979 = vrot.slane %v967, %v978
    %v980 = vadd.f32 %v972, %v979
    %v981 = vadd.f32 %v973, %v979
    %v982 = vadd.f32 %v974, %v979
    %v983 = vadd.f32 %v975, %v979
    %v984 = vmax.f32 %v980, 0.0
    %v985 = vmax.f32 %v981, 0.0
    %v986 = vmax.f32 %v982, 0.0
    %v987 = vmax.f32 %v983, 0.0
    %v992 = vrot.slane %v984, 1
    %v993 = vrot.slane %v985, 1
    %v994 = vsel %vm155, %v992, %v993
    %v995 = vrot.slane %v986, 1
    %v996 = vsel %vm155, %v993, %v995
    %v997 = vrot.slane %v987, 1
    %v998 = vsel %vm155, %v995, %v997
    %v1003 = vsel %vm155, %v997, 0.0
    %v1004 = vadd.f32 %v984, %v994
    %v1005 = vadd.f32 %v985, %v996
    %v1006 = vadd.f32 %v986, %v998
    %v1007 = vadd.f32 %v987, %v1003
    %1012 = vrot.lane.b32.xlu0 %v1004, 120
    %v1013 = vpop.permute.xlu0 %1012
    %1014 = vrot.lane.b32.xlu0 %v1005, 120
    %v1015 = vpop.permute.xlu0 %1014
    %1016 = vrot.lane.b32.xlu0 %v1006, 120
    %v1017 = vpop.permute.xlu0 %1016
    %1018 = vrot.lane.b32.xlu0 %v1007, 120
    %v1019 = vpop.permute.xlu0 %1018
    %vm1024 = vcmask 982016
    %v1025 = vsel %vm1024, %v1013, 0.0
    %v1026 = vsel %vm1024, %v1015, 0.0
    %v1027 = vsel %vm1024, %v1017, 0.0
    %v1028 = vsel %vm1024, %v1019, 0.0
    %v1029 = vadd.f32 %v1004, %v1025
    %v1030 = vadd.f32 %v1005, %v1026
    %v1031 = vadd.f32 %v1006, %v1027
    %v1032 = vadd.f32 %v1007, %v1028
    %v1033 = vmul.f32 %v1029, 0.25
    %v1034 = vmul.f32 %v1030, 0.25
    %v1035 = vmul.f32 %v1031, 0.25
    %v1036 = vmul.f32 %v1032, 0.25
    %1037 = vst [vmem:[#allocation8] sm:$0xff] %v1033
    %1038 = vst [vmem:[#allocation8 + $0x8] sm:$0xff] %v1034
    %1039 = vst [vmem:[#allocation8 + $0x10] sm:$0xff] %v1035
    %1040 = vst [vmem:[#allocation8 + $0x18] sm:$0xff] %v1036
    // Predicated region
    $region30: #{tpu_custom_call.1} parent=1 // pred_check
      _
    $region31: #{tpu_custom_call.1} parent=1 // pred_check_branch
      %1042 = sbr.rel (0) target = $region33
    $region32: #{tpu_custom_call.1} parent=1 // pred_region
      %s1044 = ssub.s32 512, 512
      %1045 = vsyncadd [#allocation4], %s1044
      %s1046 = sshll.u32 [#allocation8], 4
      %s1047 = int_to_ptr.vmem [resolvable:$true] %s1046
      %1052 = dma.vmem_to_hbm [thread:$0]  %s1047, 512, %s4, [#allocation4], 128, 128, 8
    $region33: #{tpu_custom_call.1} parent=1 // pred_fallthru
      _
    // Predicated region
    $region34: #{tpu_custom_call.1} parent=1 // pred_check
      _
    $region35: #{tpu_custom_call.1} parent=1 // pred_check_branch
      %1054 = sbr.rel (0) target = $region37
    $region36: #{tpu_custom_call.1} parent=1 // pred_region
      %1055 = dma.done [#allocation4], 512
    $region37: #{tpu_custom_call.1} parent=1 // pred_fallthru
      _
    %1056 = vsyncpa [#allocation3], 1
    %1057 = vsyncpa [#allocation6], 1
    %1058 = vsyncpa [#allocation4], 1

</llo_original>
